<compile_context>
chip_gen: v6e
topology: v6e:2x2x1
jax: 0.10.0
libtpu: 0.0.40
codegen_flags: <defaults>
</compile_context>

<pallas_src>
import functools
import math

import jax
import jax.numpy as jnp
from jax import lax
from jax.experimental import pallas as pl
from jax.experimental.pallas import tpu as pltpu


# ---------------------------------------------------------------------------
# Pallas kernel: Agentembedding.forward for one tile of TILE_B batch elements
# ---------------------------------------------------------------------------
def agent_embedding_kernel(fc_ref, f_ref, wq_ref, bq_ref, wkv_ref, bkv_ref,
                           out_ref, *, key_size):
    fc = fc_ref[...][:, 0, :]                      # (TB, 2F)
    f3 = f_ref[...]                                # (TB, N, F)

    # q projection (scale 1/sqrt(K) already folded into wq/bq by the wrapper)
    q = jnp.dot(fc, wq_ref[...],
                preferred_element_type=jnp.float32) + bq_ref[...]        # (TB, K)

    # fused K|V projection: one lane-dense matmul with M = TB*N rows
    kv = lax.dot_general(
        f3, wkv_ref[...],
        dimension_numbers=(((2,), (0,)), ((), ())),
        preferred_element_type=jnp.float32) + bkv_ref[...]               # (TB, N, K+V)
    k3 = kv[:, :, :key_size]                                             # (TB, N, K)
    v3 = kv[:, :, key_size:]                                             # (TB, N, V)

    # u[b, n] = <k[b, n, :], q[b, :]>  -- broadcast multiply + lane reduction
    u = jnp.sum(k3 * q[:, None, :], axis=-1)                             # (TB, N)

    # softmax over the node axis (dim=-2 of the PyTorch (N, 1) scores)
    u = u - jnp.max(u, axis=-1, keepdims=True)
    e = jnp.exp(u)
    denom = jnp.sum(e, axis=-1, keepdims=True)
    w = e * pl.reciprocal(denom, approx=False)                           # (TB, N)

    # agent_embedding[b, :] = sum_n w[b, n] * v[b, n, :]
    emb = jnp.sum(w[:, :, None] * v3, axis=1)                            # (TB, V)

    out_ref[...] = emb[:, None, :]                                       # (TB, 1, V)


# ---------------------------------------------------------------------------
# Wrapper
# ---------------------------------------------------------------------------
def _pick_tile_b(batch, n_nodes, feat, val_size, *, max_tile=128,
                 vmem_budget_bytes=24 * 1024 * 1024):
    """Largest divisor of `batch` that fits a conservative VMEM budget
    (sized for v7x's smaller VMEM); prefers >= 2 grid tiles (2 TCs on v7x)."""
    # f32 bytes per batch row: double-buffered fc + f input tiles and out tile
    per_row = 4 * 2 * (2 * feat + n_nodes * feat + val_size)
    cap = int(max(1, min(batch, max_tile, vmem_budget_bytes // max(per_row, 1))))
    tile = 1
    for d in range(1, cap + 1):
        if batch % d == 0:
            tile = d
    if batch // tile < 2 and tile > 1:
        for d in range(tile - 1, 0, -1):
            if batch % d == 0 and batch // d >= 2:
                return d
    return tile


def agent_embedding_forward(f_c, f, params, *, tile_b=None):
    """f_c: (B, 1, 2F); f: (B, N, F) -> agent embedding (B, 1, V)."""
    n_batch, _, two_f = f_c.shape
    _, n_nodes, feat = f.shape
    key_size = params["Wq"].shape[1]
    val_size = params["Wv"].shape[1]
    assert two_f == 2 * feat

    if tile_b is None:
        tile_b = _pick_tile_b(n_batch, n_nodes, feat, val_size)
    assert n_batch % tile_b == 0
    grid = (n_batch // tile_b,)

    # Fold 1/sqrt(K) into the q projection; fuse K|V weights into one slab.
    scale = 1.0 / math.sqrt(key_size)
    wq_s = (params["Wq"] * scale).astype(jnp.float32)                # (2F, K)
    bq_s = (params["bq"] * scale).reshape(1, key_size).astype(jnp.float32)
    wkv = jnp.concatenate([params["Wk"], params["Wv"]], axis=1).astype(jnp.float32)
    bkv = jnp.concatenate([params["bk"], params["bv"]], axis=0).reshape(
        1, key_size + val_size).astype(jnp.float32)

    kernel = functools.partial(agent_embedding_kernel, key_size=key_size)

    def const2d(shape):
        return pl.BlockSpec(shape, lambda b: (0, 0))

    return pl.pallas_call(
        kernel,
        out_shape=jax.ShapeDtypeStruct((n_batch, 1, val_size), jnp.float32),
        grid=grid,
        in_specs=[
            pl.BlockSpec((tile_b, 1, two_f), lambda b: (b, 0, 0)),       # f_c
            pl.BlockSpec((tile_b, n_nodes, feat), lambda b: (b, 0, 0)),  # f
            const2d((two_f, key_size)),                                  # Wq (pre-scaled)
            const2d((1, key_size)),                                      # bq (pre-scaled)
            const2d((feat, key_size + val_size)),                        # [Wk | Wv]
            const2d((1, key_size + val_size)),                           # [bk | bv]
        ],
        out_specs=pl.BlockSpec((tile_b, 1, val_size), lambda b: (b, 0, 0)),
        compiler_params=pltpu.CompilerParams(
            dimension_semantics=("parallel",)),
    )(f_c, f, wq_s, bq_s, wkv, bkv)


# ---------------------------------------------------------------------------
# Pure-JAX reference (mirrors the PyTorch module) + param init
# ---------------------------------------------------------------------------
def reference_agent_embedding(f_c, f, params):
    key_size = params["Wq"].shape[1]
    q = f_c @ params["Wq"] + params["bq"]                               # (B, 1, K)
    k = f @ params["Wk"] + params["bk"]                                 # (B, N, K)
    v = f @ params["Wv"] + params["bv"]                                 # (B, N, V)
    u = jnp.matmul(k, jnp.swapaxes(q, -1, -2)) / math.sqrt(key_size)    # (B, N, 1)
    u_ = jnp.swapaxes(jax.nn.softmax(u, axis=-2), -1, -2)               # (B, 1, N)
    return jnp.matmul(u_, v)                                            # (B, 1, V)


def make_params(key, *, node_feature_size, key_size, value_size):
    ks = jax.random.split(key, 6)

    def lin(k, fan_in, shape):
        lim = 1.0 / math.sqrt(fan_in)
        return jax.random.uniform(k, shape, jnp.float32, -lim, lim)

    nf = node_feature_size
    return {
        "Wq": lin(ks[0], 2 * nf, (2 * nf, key_size)),
        "bq": lin(ks[1], 2 * nf, (key_size,)),
        "Wk": lin(ks[2], nf, (nf, key_size)),
        "bk": lin(ks[3], nf, (key_size,)),
        "Wv": lin(ks[4], nf, (nf, value_size)),
        "bv": lin(ks[5], nf, (value_size,)),
    }


if __name__ == "__main__":
    # Small, module-consistent shapes: f_c is (B, 1, 2*F) (graph + depot feats),
    # f is (B, N, F) (per-node features without depot).
    n_batch, n_nodes, feat = 8, 16, 32
    key_size, val_size = 32, 32

    root = jax.random.PRNGKey(0)
    k_fc, k_f, k_p = jax.random.split(root, 3)

    f_c = jax.random.normal(k_fc, (n_batch, 1, 2 * feat), jnp.float32)
    f = jax.random.normal(k_f, (n_batch, n_nodes, feat), jnp.float32)
    params = make_params(k_p, node_feature_size=feat,
                         key_size=key_size, value_size=val_size)

    out = agent_embedding_forward(f_c, f, params)
    out = jax.block_until_ready(out)

    ref = reference_agent_embedding(f_c, f, params)

    assert out.shape == (n_batch, 1, val_size), out.shape
    assert jnp.allclose(out, ref, atol=1e-5, rtol=1e-5), "mismatch vs JAX reference"
    print("KERNEL_OK")
</pallas_src>

<mosaic_0001>
module attributes {stable_mosaic.version = 11 : i64} {
  func.func @agent_embedding_kernel(%arg0: i32, %arg1: memref<4x1x64xf32, #tpu.memory_space<vmem>>, %arg2: memref<4x16x32xf32, #tpu.memory_space<vmem>>, %arg3: memref<64x32xf32, #tpu.memory_space<vmem>>, %arg4: memref<1x32xf32, #tpu.memory_space<vmem>>, %arg5: memref<32x64xf32, #tpu.memory_space<vmem>>, %arg6: memref<1x64xf32, #tpu.memory_space<vmem>>, %arg7: memref<4x1x32xf32, #tpu.memory_space<vmem>>) attributes {dimension_semantics = [#tpu.dimension_semantics<parallel>], iteration_bounds = array<i64: 2>, scalar_prefetch = 0 : i64, scratch_operands = 0 : i64, tpu.core_type = #tpu.core_type<tc>, window_params = [{transform_indices = @transform_0, window_bounds = array<i64: 4, 1, 64>}, {transform_indices = @transform_1, window_bounds = array<i64: 4, 16, 32>}, {pipeline_mode = #tpu.pipeline_mode<synchronous>, transform_indices = @transform_2, window_bounds = array<i64: 64, 32>}, {pipeline_mode = #tpu.pipeline_mode<synchronous>, transform_indices = @transform_3, window_bounds = array<i64: 1, 32>}, {pipeline_mode = #tpu.pipeline_mode<synchronous>, transform_indices = @transform_4, window_bounds = array<i64: 32, 64>}, {pipeline_mode = #tpu.pipeline_mode<synchronous>, transform_indices = @transform_5, window_bounds = array<i64: 1, 64>}, {transform_indices = @transform_6, window_bounds = array<i64: 4, 1, 32>}]} {
    %c0 = arith.constant 0 : index
    %c0_0 = arith.constant 0 : index
    %c0_1 = arith.constant 0 : index
    %0 = vector.load %arg1[%c0, %c0_0, %c0_1] : memref<4x1x64xf32, #tpu.memory_space<vmem>>, vector<4x1x64xf32>
    %1 = vector.shape_cast %0 : vector<4x1x64xf32> to vector<4x64xf32>
    %c0_2 = arith.constant 0 : index
    %c0_3 = arith.constant 0 : index
    %c0_4 = arith.constant 0 : index
    %2 = vector.load %arg2[%c0_2, %c0_3, %c0_4] : memref<4x16x32xf32, #tpu.memory_space<vmem>>, vector<4x16x32xf32>
    %c0_5 = arith.constant 0 : index
    %c0_6 = arith.constant 0 : index
    %3 = vector.load %arg3[%c0_5, %c0_6] : memref<64x32xf32, #tpu.memory_space<vmem>>, vector<64x32xf32>
    %cst = arith.constant dense<0.000000e+00> : vector<4x32xf32>
    %4 = tpu.matmul %1, %3, %cst {dimension_numbers = #tpu.dot_dimension_numbers<[1], [0], [0], [1], [0, 0, 1, 1], [], []>} : vector<4x64xf32>, vector<64x32xf32>, vector<4x32xf32> -> vector<4x32xf32>
    %c0_7 = arith.constant 0 : index
    %c0_8 = arith.constant 0 : index
    %5 = vector.load %arg4[%c0_7, %c0_8] : memref<1x32xf32, #tpu.memory_space<vmem>>, vector<1x32xf32>
    %6 = vector.broadcast %5 : vector<1x32xf32> to vector<4x32xf32>
    %7 = arith.addf %4, %6 : vector<4x32xf32>
    %c0_9 = arith.constant 0 : index
    %c0_10 = arith.constant 0 : index
    %8 = vector.load %arg5[%c0_9, %c0_10] : memref<32x64xf32, #tpu.memory_space<vmem>>, vector<32x64xf32>
    %cst_11 = arith.constant dense<0.000000e+00> : vector<4x16x64xf32>
    %9 = tpu.matmul %2, %8, %cst_11 {dimension_numbers = #tpu.dot_dimension_numbers<[2], [0], [0, 1], [1], [0, 0, 0, 1, 1, 1], [], []>} : vector<4x16x32xf32>, vector<32x64xf32>, vector<4x16x64xf32> -> vector<4x16x64xf32>
    %c0_12 = arith.constant 0 : index
    %c0_13 = arith.constant 0 : index
    %10 = vector.load %arg6[%c0_12, %c0_13] : memref<1x64xf32, #tpu.memory_space<vmem>>, vector<1x64xf32>
    %11 = vector.shape_cast %10 : vector<1x64xf32> to vector<1x1x64xf32>
    %12 = vector.broadcast %11 : vector<1x1x64xf32> to vector<4x16x64xf32>
    %13 = arith.addf %9, %12 : vector<4x16x64xf32>
    %14 = vector.extract_strided_slice %13 {offsets = [0, 0, 0], sizes = [4, 16, 32], strides = [1, 1, 1]} : vector<4x16x64xf32> to vector<4x16x32xf32>
    %15 = vector.extract_strided_slice %13 {offsets = [0, 0, 32], sizes = [4, 16, 32], strides = [1, 1, 1]} : vector<4x16x64xf32> to vector<4x16x32xf32>
    %16 = vector.shape_cast %7 : vector<4x32xf32> to vector<4x1x32xf32>
    %17 = vector.broadcast %16 : vector<4x1x32xf32> to vector<4x16x32xf32>
    %18 = arith.mulf %14, %17 : vector<4x16x32xf32>
    %cst_14 = arith.constant dense<0.000000e+00> : vector<4x16xf32>
    %19 = vector.multi_reduction <add>, %18, %cst_14 [2] : vector<4x16x32xf32> to vector<4x16xf32>
    %cst_15 = arith.constant dense<0xFF800000> : vector<4xf32>
    %20 = vector.multi_reduction <maximumf>, %19, %cst_15 [1] : vector<4x16xf32> to vector<4xf32>
    %21 = vector.shape_cast %20 : vector<4xf32> to vector<4x1xf32>
    %22 = vector.broadcast %21 : vector<4x1xf32> to vector<4x16xf32>
    %23 = arith.subf %19, %22 : vector<4x16xf32>
    %24 = math.exp %23 : vector<4x16xf32>
    %cst_16 = arith.constant dense<0.000000e+00> : vector<4xf32>
    %25 = vector.multi_reduction <add>, %24, %cst_16 [1] : vector<4x16xf32> to vector<4xf32>
    %26 = vector.shape_cast %25 : vector<4xf32> to vector<4x1xf32>
    %27 = tpu.reciprocal %26 : vector<4x1xf32> -> vector<4x1xf32>
    %28 = vector.broadcast %27 : vector<4x1xf32> to vector<4x16xf32>
    %29 = arith.mulf %24, %28 : vector<4x16xf32>
    %30 = vector.shape_cast %29 : vector<4x16xf32> to vector<4x16x1xf32>
    %31 = vector.broadcast %30 : vector<4x16x1xf32> to vector<4x16x32xf32>
    %32 = arith.mulf %31, %15 : vector<4x16x32xf32>
    %cst_17 = arith.constant dense<0.000000e+00> : vector<4x32xf32>
    %33 = vector.multi_reduction <add>, %32, %cst_17 [1] : vector<4x16x32xf32> to vector<4x32xf32>
    %34 = vector.shape_cast %33 : vector<4x32xf32> to vector<4x1x32xf32>
    %c0_18 = arith.constant 0 : index
    %c0_19 = arith.constant 0 : index
    %c0_20 = arith.constant 0 : index
    %35 = vector.load %arg7[%c0_18, %c0_19, %c0_20] : memref<4x1x32xf32, #tpu.memory_space<vmem>>, vector<4x1x32xf32>
    tpu.vector_store %arg7[%c0_18, %c0_19, %c0_20], %34 {strides = array<i32>} : memref<4x1x32xf32, #tpu.memory_space<vmem>>, vector<4x1x32xf32>,
    return
  }
  func.func @transform_0(%arg0: i32) -> (i32, i32, i32) {
    %c0_i32 = arith.constant 0 : i32
    %c0_i32_0 = arith.constant 0 : i32
    %c0_i32_1 = arith.constant 0 : i32
    return %arg0, %c0_i32, %c0_i32_0 : i32, i32, i32
  }
  func.func @transform_1(%arg0: i32) -> (i32, i32, i32) {
    %c0_i32 = arith.constant 0 : i32
    %c0_i32_0 = arith.constant 0 : i32
    %c0_i32_1 = arith.constant 0 : i32
    return %arg0, %c0_i32, %c0_i32_0 : i32, i32, i32
  }
  func.func @transform_2(%arg0: i32) -> (i32, i32) {
    %c0_i32 = arith.constant 0 : i32
    %c0_i32_0 = arith.constant 0 : i32
    %c0_i32_1 = arith.constant 0 : i32
    return %c0_i32, %c0_i32_0 : i32, i32
  }
  func.func @transform_3(%arg0: i32) -> (i32, i32) {
    %c0_i32 = arith.constant 0 : i32
    %c0_i32_0 = arith.constant 0 : i32
    %c0_i32_1 = arith.constant 0 : i32
    return %c0_i32, %c0_i32_0 : i32, i32
  }
  func.func @transform_4(%arg0: i32) -> (i32, i32) {
    %c0_i32 = arith.constant 0 : i32
    %c0_i32_0 = arith.constant 0 : i32
    %c0_i32_1 = arith.constant 0 : i32
    return %c0_i32, %c0_i32_0 : i32, i32
  }
  func.func @transform_5(%arg0: i32) -> (i32, i32) {
    %c0_i32 = arith.constant 0 : i32
    %c0_i32_0 = arith.constant 0 : i32
    %c0_i32_1 = arith.constant 0 : i32
    return %c0_i32, %c0_i32_0 : i32, i32
  }
  func.func @transform_6(%arg0: i32) -> (i32, i32, i32) {
    %c0_i32 = arith.constant 0 : i32
    %c0_i32_0 = arith.constant 0 : i32
    %c0_i32_1 = arith.constant 0 : i32
    return %arg0, %c0_i32, %c0_i32_0 : i32, i32, i32
  }
}

</mosaic_0001>

<llo_original>
// kernel: tpu_custom_call.1
$region0: #{tpu_custom_call.1}
  #allocation0 [shape = 'u32[]', space=smem, size = 0x4, offset = 0x4, fixed_abs, tag = 'smem constant byte address 0x4 - core index']
  #allocation1 [shape = 'u32[144,128]{1,0:T(1,128)}', space=vmem, size = 0x12000, scoped, tag = 'internal scratch']
  %s0 = inlined_call_operand.vmem [shape: f32[8,1,64], index: 0, kind: input, shape index: {}]
  %s1 = inlined_call_operand.hbm [shape: f32[8,16,32], index: 1, kind: input, shape index: {}]
  %s2 = inlined_call_operand.vmem [shape: f32[64,32], index: 2, kind: input, shape index: {}]
  %s3 = inlined_call_operand.vmem [shape: f32[1,32], index: 3, kind: input, shape index: {}]
  %s4 = inlined_call_operand.vmem [shape: f32[32,64], index: 4, kind: input, shape index: {}]
  %s5 = inlined_call_operand.vmem [shape: f32[1,64], index: 5, kind: input, shape index: {}]
  %s6 = inlined_call_operand.hbm [shape: f32[8,1,32], index: 6, kind: output, shape index: {}]
  %s7 = sld [smem:[#allocation0]]
  $region61: #{tpu_custom_call.1} parent=0
    _
  %s9 = ssub.s32 1, %s7
  %s10 = scalar_select 0, %s9, %s7
  $region1: #{tpu_custom_call.1} parent=0
    #allocation2 [shape = 'u8[65536]{0}', space=vmem, size = 0x10000, scoped, tag = 'input window, operand 1']
    #allocation3 [shape = 's32[2]{0}', space=sflag, size = 0x8, scoped, tag = 'scoped memory for tpu_custom_call.1']
    #allocation4 [shape = 's32[2]{0}', space=sflag, size = 0x8, scoped, tag = 'scoped memory for tpu_custom_call.1']
    #allocation5 [shape = 'u8[4096]{0}', space=vmem, size = 0x1000, scoped, tag = 'output window, operand 0']
    %11 = vsyncpa [#allocation3], 0
    %s12 = scalar_lea.sflag [#allocation3], 1
    %13 = vsyncpa %s12, 0
    %14 = vsyncpa [#allocation4], 0
    %s15 = scalar_lea.sflag [#allocation4], 1
    %16 = vsyncpa %s15, 0
    loop: start=0, step=1, limit=4
    $region2: #{tpu_custom_call.1} parent=1 // loop_pre_header
      _
    $region3: #{tpu_custom_call.1} parent=1 // loop_header
      %s18 = sphi 0, %s22
      %p19 = scmp.ge.s32.totalorder %s18, 4
      %s28 = sphi 0, %s30
      %s31 = sphi 0, %s28
      %s32 = sphi 0, %s31
      %s48 = sphi 0, %s32
      %s54 = sphi 0, %s56
      %s57 = sphi 0, %s54
      %s58 = sphi 0, %s57
      %s74 = sphi 0, %s58
      %s78 = sphi 0, %s78
      %s80 = sphi 0, %s78
      %s81 = sphi 0, %s80
      %s95 = sphi 0, %s81
      %s99 = sphi 0, %s99
      %s101 = sphi 0, %s99
      %s102 = sphi 0, %s101
      %s116 = sphi 0, %s102
      %s120 = sphi 0, %s120
      %s122 = sphi 0, %s120
      %s123 = sphi 0, %s122
      %s137 = sphi 0, %s123
      %s141 = sphi 0, %s141
      %s143 = sphi 0, %s141
      %s144 = sphi 0, %s143
      %s158 = sphi 0, %s144
      %s164 = sphi 0, %s166
      %s167 = sphi 0, %s164
      %s168 = sphi 0, %s167
      %s184 = sphi 0, %s168
    $region4: #{tpu_custom_call.1} parent=1 // loop_header_branch
      %21 = sbr.rel (%p19) target = $region8
    $region5: #{tpu_custom_call.1} parent=1 // loop_body
      %s23 = ssub.s32 %s18, 1
      %s24 = ssub.s32 %s18, 2
      %s25 = sadd.s32 %s18, 1
      %s26 = ssub.s32 %s18, %s25
      %p27 = scmp.eq.s32.totalorder %s26, 0
      %s29 = sadd.s32 %s28, 1
      %s30 = scalar_select %p27, %s28, %s29
      %p33 = pneg %p27
      %p34 = scmp.eq.s32.totalorder %s18, 1
      %p35 = por %p33, %p34
      %p36 = scmp.ne.s32.totalorder %s28, %s31
      %p37 = scmp.eq.s32.totalorder %s18, 0
      %p38 = por %p36, %p37
      %p39 = scmp.ne.s32.totalorder %s28, %s31
      %p40 = scmp.eq.s32.totalorder %s23, 1
      %p41 = por %p39, %p40
      %p42 = scmp.ne.s32.totalorder %s31, %s32
      %p43 = scmp.eq.s32.totalorder %s23, 0
      %p44 = por %p42, %p43
      %p45 = scmp.ne.s32.totalorder %s31, %s32
      %p46 = scmp.eq.s32.totalorder %s24, 1
      %p47 = por %p45, %p46
      %p49 = scmp.ne.s32.totalorder %s32, %s48
      %p50 = scmp.eq.s32.totalorder %s24, 0
      %p51 = por %p49, %p50
      %s52 = ssub.s32 %s18, %s25
      %p53 = scmp.eq.s32.totalorder %s52, 0
      %s55 = sadd.s32 %s54, 1
      %s56 = scalar_select %p53, %s54, %s55
      %p59 = pneg %p53
      %p60 = scmp.eq.s32.totalorder %s18, 1
      %p61 = por %p59, %p60
      %p62 = scmp.ne.s32.totalorder %s54, %s57
      %p63 = scmp.eq.s32.totalorder %s18, 0
      %p64 = por %p62, %p63
      %p65 = scmp.ne.s32.totalorder %s54, %s57
      %p66 = scmp.eq.s32.totalorder %s23, 1
      %p67 = por %p65, %p66
      %p68 = scmp.ne.s32.totalorder %s57, %s58
      %p69 = scmp.eq.s32.totalorder %s23, 0
      %p70 = por %p68, %p69
      %p71 = scmp.ne.s32.totalorder %s57, %s58
      %p72 = scmp.eq.s32.totalorder %s24, 1
      %p73 = por %p71, %p72
      %p75 = scmp.ne.s32.totalorder %s58, %s74
      %p76 = scmp.eq.s32.totalorder %s24, 0
      %p77 = por %p75, %p76
      %s79 = sadd.s32 %s78, 1
      %p82 = scmp.eq.s32.totalorder %s18, 1
      %p83 = scmp.ne.s32.totalorder %s78, %s80
      %p84 = scmp.eq.s32.totalorder %s18, 0
      %p85 = por %p83, %p84
      %p86 = scmp.ne.s32.totalorder %s78, %s80
      %p87 = scmp.eq.s32.totalorder %s23, 1
      %p88 = por %p86, %p87
      %p89 = scmp.ne.s32.totalorder %s80, %s81
      %p90 = scmp.eq.s32.totalorder %s23, 0
      %p91 = por %p89, %p90
      %p92 = scmp.ne.s32.totalorder %s80, %s81
      %p93 = scmp.eq.s32.totalorder %s24, 1
      %p94 = por %p92, %p93
      %p96 = scmp.ne.s32.totalorder %s81, %s95
      %p97 = scmp.eq.s32.totalorder %s24, 0
      %p98 = por %p96, %p97
      %s100 = sadd.s32 %s99, 1
      %p103 = scmp.eq.s32.totalorder %s18, 1
      %p104 = scmp.ne.s32.totalorder %s99, %s101
      %p105 = scmp.eq.s32.totalorder %s18, 0
      %p106 = por %p104, %p105
      %p107 = scmp.ne.s32.totalorder %s99, %s101
      %p108 = scmp.eq.s32.totalorder %s23, 1
      %p109 = por %p107, %p108
      %p110 = scmp.ne.s32.totalorder %s101, %s102
      %p111 = scmp.eq.s32.totalorder %s23, 0
      %p112 = por %p110, %p111
      %p113 = scmp.ne.s32.totalorder %s101, %s102
      %p114 = scmp.eq.s32.totalorder %s24, 1
      %p115 = por %p113, %p114
      %p117 = scmp.ne.s32.totalorder %s102, %s116
      %p118 = scmp.eq.s32.totalorder %s24, 0
      %p119 = por %p117, %p118
      %s121 = sadd.s32 %s120, 1
      %p124 = scmp.eq.s32.totalorder %s18, 1
      %p125 = scmp.ne.s32.totalorder %s120, %s122
      %p126 = scmp.eq.s32.totalorder %s18, 0
      %p127 = por %p125, %p126
      %p128 = scmp.ne.s32.totalorder %s120, %s122
      %p129 = scmp.eq.s32.totalorder %s23, 1
      %p130 = por %p128, %p129
      %p131 = scmp.ne.s32.totalorder %s122, %s123
      %p132 = scmp.eq.s32.totalorder %s23, 0
      %p133 = por %p131, %p132
      %p134 = scmp.ne.s32.totalorder %s122, %s123
      %p135 = scmp.eq.s32.totalorder %s24, 1
      %p136 = por %p134, %p135
      %p138 = scmp.ne.s32.totalorder %s123, %s137
      %p139 = scmp.eq.s32.totalorder %s24, 0
      %p140 = por %p138, %p139
      %s142 = sadd.s32 %s141, 1
      %p145 = scmp.eq.s32.totalorder %s18, 1
      %p146 = scmp.ne.s32.totalorder %s141, %s143
      %p147 = scmp.eq.s32.totalorder %s18, 0
      %p148 = por %p146, %p147
      %p149 = scmp.ne.s32.totalorder %s141, %s143
      %p150 = scmp.eq.s32.totalorder %s23, 1
      %p151 = por %p149, %p150
      %p152 = scmp.ne.s32.totalorder %s143, %s144
      %p153 = scmp.eq.s32.totalorder %s23, 0
      %p154 = por %p152, %p153
      %p155 = scmp.ne.s32.totalorder %s143, %s144
      %p156 = scmp.eq.s32.totalorder %s24, 1
      %p157 = por %p155, %p156
      %p159 = scmp.ne.s32.totalorder %s144, %s158
      %p160 = scmp.eq.s32.totalorder %s24, 0
      %p161 = por %p159, %p160
      %s162 = ssub.s32 %s18, %s25
      %p163 = scmp.eq.s32.totalorder %s162, 0
      %s165 = sadd.s32 %s164, 1
      %s166 = scalar_select %p163, %s164, %s165
      %p169 = pneg %p163
      %p170 = scmp.eq.s32.totalorder %s18, 1
      %p171 = por %p169, %p170
      %p172 = scmp.ne.s32.totalorder %s164, %s167
      %p173 = scmp.eq.s32.totalorder %s18, 0
      %p174 = por %p172, %p173
      %p175 = scmp.ne.s32.totalorder %s164, %s167
      %p176 = scmp.eq.s32.totalorder %s23, 1
      %p177 = por %p175, %p176
      %p178 = scmp.ne.s32.totalorder %s167, %s168
      %p179 = scmp.eq.s32.totalorder %s23, 0
      %p180 = por %p178, %p179
      %p181 = scmp.ne.s32.totalorder %s167, %s168
      %p182 = scmp.eq.s32.totalorder %s24, 1
      %p183 = por %p181, %p182
      %p185 = scmp.ne.s32.totalorder %s168, %s184
      %p186 = scmp.eq.s32.totalorder %s24, 0
      %p187 = por %p185, %p186
      %p188 = scmp.le.s32.totalorder 1, %s18
      %p189 = scmp.lt.s32.totalorder %s18, 3
      %p190 = pnand %p188, %p189
      %p191 = pneg %p190
      // Predicated region
      $region9: #{tpu_custom_call.1} parent=5 // pred_check
        _
      $region10: #{tpu_custom_call.1} parent=5 // pred_check_branch
        %193 = sbr.rel (%p190) target = $region12
      $region11: #{tpu_custom_call.1} parent=5 // pred_region
        %s194 = ssub.s32 %s18, 1
        // Predicated region
        $region13: #{tpu_custom_call.1} parent=11 // pred_check
          %p195 = pneg %p91
        $region14: #{tpu_custom_call.1} parent=11 // pred_check_branch
          %197 = sbr.rel (%p195) target = $region16
        $region15: #{tpu_custom_call.1} parent=11 // pred_region
          _
        $region16: #{tpu_custom_call.1} parent=11 // pred_fallthru
          _
        // Predicated region
        $region17: #{tpu_custom_call.1} parent=11 // pred_check
          %p198 = pneg %p112
        $region18: #{tpu_custom_call.1} parent=11 // pred_check_branch
          %200 = sbr.rel (%p198) target = $region20
        $region19: #{tpu_custom_call.1} parent=11 // pred_region
          _
        $region20: #{tpu_custom_call.1} parent=11 // pred_fallthru
          _
        // Predicated region
        $region21: #{tpu_custom_call.1} parent=11 // pred_check
          %p201 = pneg %p133
        $region22: #{tpu_custom_call.1} parent=11 // pred_check_branch
          %203 = sbr.rel (%p201) target = $region24
        $region23: #{tpu_custom_call.1} parent=11 // pred_region
          _
        $region24: #{tpu_custom_call.1} parent=11 // pred_fallthru
          _
        // Predicated region
        $region25: #{tpu_custom_call.1} parent=11 // pred_check
          %p204 = pneg %p154
        $region26: #{tpu_custom_call.1} parent=11 // pred_check_branch
          %206 = sbr.rel (%p204) target = $region28
        $region27: #{tpu_custom_call.1} parent=11 // pred_region
          _
        $region28: #{tpu_custom_call.1} parent=11 // pred_fallthru
          _
      $region12: #{tpu_custom_call.1} parent=5 // pred_fallthru
        _
      %p207 = scmp.lt.s32.totalorder %s18, 2
      // Predicated region
      $region29: #{tpu_custom_call.1} parent=5 // pred_check
        %p208 = pneg %p207
      $region30: #{tpu_custom_call.1} parent=5 // pred_check_branch
        %210 = sbr.rel (%p208) target = $region32
      $region31: #{tpu_custom_call.1} parent=5 // pred_region
        // Predicated region
        $region33: #{tpu_custom_call.1} parent=31 // pred_check
          %p211 = pneg %p38
        $region34: #{tpu_custom_call.1} parent=31 // pred_check_branch
          %213 = sbr.rel (%p211) target = $region36
        $region35: #{tpu_custom_call.1} parent=31 // pred_region
          %s214 = smul.u32 4, %s18
          %p215 = scmp.lt.s32.totalorder %s214, 7
          %s216 = scalar_select %p215, %s214, 7
          %s217 = scalar_lea.vmem %s0, %s216
          %s218 = smul.u32 4, %s18
        $region36: #{tpu_custom_call.1} parent=31 // pred_fallthru
          _
        // Predicated region
        $region37: #{tpu_custom_call.1} parent=31 // pred_check
          %p219 = pneg %p64
        $region38: #{tpu_custom_call.1} parent=31 // pred_check_branch
          %221 = sbr.rel (%p219) target = $region40
        $region39: #{tpu_custom_call.1} parent=31 // pred_region
          %s222 = sand.u32 %s54, 1
          %s223 = scalar_lea.sflag [#allocation3], %s222
          %s224 = sand.u32 %s54, 1
          %s225 = smul.addr %s224, 64
          %s226 = scalar_lea.vmem [#allocation2], %s225
          %s227 = smul.u32 4, %s18
          %s229 = ssub.s32 1024, 1024
          %230 = vsyncadd %s223, %s229
          %s231 = smul.addr %s227, 2
          %s232 = smul.addr %s231, 128
          %s233 = scalar_lea.hbm %s1, %s232
          %s234 = sshll.u32 %s226, 4
          %s235 = int_to_ptr.vmem [resolvable:$true] %s234
          %240 = dma.hbm_to_vmem [thread:$0]  %s233, 1024, %s235, %s223, 128, 128, 8
        $region40: #{tpu_custom_call.1} parent=31 // pred_fallthru
          _
      $region32: #{tpu_custom_call.1} parent=5 // pred_fallthru
        _
      %p241 = scmp.le.s32.totalorder 1, %s18
      %p242 = scmp.lt.s32.totalorder %s18, 3
      %p243 = pnand %p241, %p242
      %p244 = pneg %p243
      // Predicated region
      $region41: #{tpu_custom_call.1} parent=5 // pred_check
        _
      $region42: #{tpu_custom_call.1} parent=5 // pred_check_branch
        %246 = sbr.rel (%p243) target = $region44
      $region43: #{tpu_custom_call.1} parent=5 // pred_region
        %s247 = ssub.s32 %s18, 1
        %s248 = sand.u32 %s57, 1
        %s249 = scalar_lea.sflag [#allocation3], %s248
        %s250 = sand.u32 %s57, 1
        %s251 = smul.addr %s250, 64
        %s252 = scalar_lea.vmem [#allocation2], %s251
        // Predicated region
        $region45: #{tpu_custom_call.1} parent=43 // pred_check
          %p253 = pneg %p70
        $region46: #{tpu_custom_call.1} parent=43 // pred_check_branch
          %255 = sbr.rel (%p253) target = $region48
        $region47: #{tpu_custom_call.1} parent=43 // pred_region
          %256 = dma.done %s249, 1024
        $region48: #{tpu_custom_call.1} parent=43 // pred_fallthru
          _
        %s257 = smul.u32 4, %s23
        %p258 = scmp.lt.s32.totalorder %s257, 7
        %s259 = scalar_select %p258, %s257, 7
        %s260 = scalar_lea.vmem %s0, %s259
        %p261 = pneg %p44
        %p262 = pneg %p41
        %s263 = sand.u32 %s57, 1
        %s264 = scalar_lea.sflag [#allocation3], %s263
        %s265 = sand.u32 %s57, 1
        %s266 = smul.addr %s265, 64
        %s267 = scalar_lea.vmem [#allocation2], %s266
        %p268 = pneg %p70
        %p269 = pneg %p67
        %p270 = pneg %p91
        %p271 = pneg %p88
        %p272 = pneg %p112
        %p273 = pneg %p109
        %p274 = pneg %p133
        %p275 = pneg %p130
        %p276 = pneg %p154
        %p277 = pneg %p151
        %p278 = pneg %p180
        %p279 = pneg %p177
        %s280 = sand.u32 %s167, 1
        %s281 = scalar_lea.sflag [#allocation4], %s280
        %s282 = sand.u32 %s167, 1
        %s283 = smul.addr %s282, 4
        %s284 = scalar_lea.vmem [#allocation5], %s283
        %s285 = smul.u32 4, %s23
        %p286 = scmp.lt.s32.totalorder %s285, 7
        %s287 = scalar_select %p286, %s285, 7
        %s288 = scalar_lea.vmem %s0, %s287
        %s289 = smul.u32 4, %s23
        %s290 = smul.u32 4, %s23
        %s291 = smul.u32 4, %s23
        %v292 = vld [vmem:[%s288] sm:$0x1]
        %v293 = vld [vmem:[%s288 + $0x1] sm:$0x1]
        %v294 = vld [vmem:[%s288 + $0x2] sm:$0x1]
        %v295 = vld [vmem:[%s288 + $0x3] sm:$0x1]
        %v296 = vld [vmem:[%s252] sm:$0xff]
        %v297 = vld [vmem:[%s252 + $0x8] sm:$0xff]
        %v298 = vld [vmem:[%s252 + $0x10] sm:$0xff]
        %v299 = vld [vmem:[%s252 + $0x18] sm:$0xff]
        %v300 = vld [vmem:[%s252 + $0x20] sm:$0xff]
        %v301 = vld [vmem:[%s252 + $0x28] sm:$0xff]
        %v302 = vld [vmem:[%s252 + $0x30] sm:$0xff]
        %v303 = vld [vmem:[%s252 + $0x38] sm:$0xff]
        %v304 = vld [vmem:[%s2] sm:$0xff]
        %v305 = vld [vmem:[%s2 + $0x8] sm:$0xff]
        %v306 = vld [vmem:[%s2 + $0x10] sm:$0xff]
        %v307 = vld [vmem:[%s2 + $0x18] sm:$0xff]
        %v308 = vld [vmem:[%s2 + $0x20] sm:$0xff]
        %v309 = vld [vmem:[%s2 + $0x28] sm:$0xff]
        %v310 = vld [vmem:[%s2 + $0x30] sm:$0xff]
        %v311 = vld [vmem:[%s2 + $0x38] sm:$0xff]
        %v312 = vld [vmem:[%s3] sm:$0x1]
        %v314 = vlaneseq
        %v315 = vshrl.u32 %v314, 7
        %v316 = vsub.s32 0, %v315
        %v317 = vrot.slane %v312, %v316
        %v323 = vcombine.low %v292, %v293
        %v324 = vcombine.low %v294, %v295
        %v326 = vunpack.c.l.s4 1966171168
        %v327 = vunpack.c.0.s8 %v326
        %v328 = vlaneseq
        %v329 = vshrl.u32 %v328, 7
        %v330 = vsub.s32 %v327, %v329
        %v331 = vrot.slane %v323, %v330
        %v333 = vunpack.c.l.s4 1966171168
        %v334 = vunpack.c.0.s8 %v333
        %v335 = vlaneseq
        %v336 = vshrl.u32 %v335, 7
        %v337 = vsub.s32 %v334, %v336
        %v338 = vrot.slane %v324, %v337
        %v339 = vcombine.low %v331, %v338
        %v341 = vunpack.c.l.s4 1966171168
        %v342 = vunpack.c.0.s8 %v341
        %v343 = vlaneseq
        %v344 = vshrl.u32 %v343, 7
        %v345 = vsub.s32 %v342, %v344
        %v346 = vrot.slane %v339, %v345
        %vm347 = vcmask 523264
        %v348 = vsel %vm347, %v346, 0
        %350 = vmatprep.subr.mxu0 0.0
        %351 = vmatpush1.msra.mxu0 0.0
        %352 = vmatprep.subr.mxu0 0.0
        %353 = vmatpush1.msra.mxu0 0.0
        %354 = vmatprep.subr.mxu0 0.0
        %355 = vmatpush1.msra.mxu0 0.0
        %356 = vmatprep.subr.mxu0 0.0
        %357 = vmatpush1.msra.mxu0 0.0
        %358 = vmatprep.subr.mxu0 0.0
        %359 = vmatpush1.msra.mxu0 0.0
        %360 = vmatprep.subr.mxu0 0.0
        %361 = vmatpush1.msra.mxu0 0.0
        %362 = vmatprep.subr.mxu0 0.0
        %363 = vmatpush1.msra.mxu0 0.0
        %364 = vmatprep.subr.mxu0 0.0
        %365 = vmatpush1.msra.mxu0 0.0
        %366 = vmatprep.subr.mxu0 0.0
        %367 = vmatpush1.msra.mxu0 %v311
        %368 = vmatprep.subr.mxu0 0.0
        %369 = vmatpush1.msra.mxu0 %v310
        %370 = vmatprep.subr.mxu0 0.0
        %371 = vmatpush1.msra.mxu0 %v309
        %372 = vmatprep.subr.mxu0 0.0
        %373 = vmatpush1.msra.mxu0 %v308
        %374 = vmatprep.subr.mxu0 0.0
        %375 = vmatpush1.msra.mxu0 %v307
        %376 = vmatprep.subr.mxu0 0.0
        %377 = vmatpush1.msra.mxu0 %v306
        %378 = vmatprep.subr.mxu0 0.0
        %379 = vmatpush1.msra.mxu0 %v305
        %380 = vmatprep.subr.mxu0 0.0
        %381 = vmatpush1.msra.mxu0 %v304
        %382 = vmatprep.subr.mxu0 0.0
        %383 = vmatpush2.msra.mxu0 0.0
        %384 = vmatprep.subr.mxu0 0.0
        %385 = vmatpush2.msra.mxu0 0.0
        %386 = vmatprep.subr.mxu0 0.0
        %387 = vmatpush2.msra.mxu0 0.0
        %388 = vmatprep.subr.mxu0 0.0
        %389 = vmatpush2.msra.mxu0 0.0
        %390 = vmatprep.subr.mxu0 0.0
        %391 = vmatpush2.msra.mxu0 0.0
        %392 = vmatprep.subr.mxu0 0.0
        %393 = vmatpush2.msra.mxu0 0.0
        %394 = vmatprep.subr.mxu0 0.0
        %395 = vmatpush2.msra.mxu0 0.0
        %396 = vmatprep.subr.mxu0 0.0
        %397 = vmatpush2.msra.mxu0 0.0
        %398 = vmatprep.subr.mxu0 0.0
        %399 = vmatpush2.msra.mxu0 0.0
        %400 = vmatprep.subr.mxu0 0.0
        %401 = vmatpush2.msra.mxu0 0.0
        %402 = vmatprep.subr.mxu0 0.0
        %403 = vmatpush2.msra.mxu0 0.0
        %404 = vmatprep.subr.mxu0 0.0
        %405 = vmatpush2.msra.mxu0 0.0
        %406 = vmatprep.subr.mxu0 0.0
        %407 = vmatpush2.msra.mxu0 0.0
        %408 = vmatprep.subr.mxu0 0.0
        %409 = vmatpush2.msra.mxu0 0.0
        %410 = vmatprep.subr.mxu0 0.0
        %411 = vmatpush2.msra.mxu0 0.0
        %412 = vmatprep.subr.mxu0 0.0
        %413 = vmatpush2.msra.mxu0 0.0
        %414 = vmatprep.mubr.f32.mxu0 0.0
        %415 = vmatmul.mubr.f32.gmra.mxu0 %v348
        %v416 = vpop.f32.mrf.mxu0
        %v417 = vadd.f32 %v317, %v416
        %v418 = vpop.f32.mrf.mxu0
        %419 = vdwg.mxu0
        %v420 = vld [vmem:[%s4] sm:$0xff]
        %v421 = vld [vmem:[%s4 + $0x8] sm:$0xff]
        %v422 = vld [vmem:[%s4 + $0x10] sm:$0xff]
        %v423 = vld [vmem:[%s4 + $0x18] sm:$0xff]
        %v424 = vld [vmem:[%s5] sm:$0x1]
        %v426 = vlaneseq
        %v427 = vshrl.u32 %v426, 7
        %v428 = vsub.s32 0, %v427
        %v429 = vrot.slane %v424, %v428
        %vm431 = vcmask 261120
        %v433 = vsel %vm431, %v296, 0
        %v436 = vsel %vm431, %v297, 0
        %v439 = vsel %vm431, %v298, 0
        %v442 = vsel %vm431, %v299, 0
        %v445 = vsel %vm431, %v300, 0
        %v448 = vsel %vm431, %v301, 0
        %v451 = vsel %vm431, %v302, 0
        %v454 = vsel %vm431, %v303, 0
        %456 = vmatprep.subr.mxu0 0.0
        %457 = vmatpush1.msra.mxu0 0.0
        %458 = vmatprep.subr.mxu0 0.0
        %459 = vmatpush1.msra.mxu0 0.0
        %460 = vmatprep.subr.mxu0 0.0
        %461 = vmatpush1.msra.mxu0 0.0
        %462 = vmatprep.subr.mxu0 0.0
        %463 = vmatpush1.msra.mxu0 0.0
        %464 = vmatprep.subr.mxu0 0.0
        %465 = vmatpush1.msra.mxu0 0.0
        %466 = vmatprep.subr.mxu0 0.0
        %467 = vmatpush1.msra.mxu0 0.0
        %468 = vmatprep.subr.mxu0 0.0
        %469 = vmatpush1.msra.mxu0 0.0
        %470 = vmatprep.subr.mxu0 0.0
        %471 = vmatpush1.msra.mxu0 0.0
        %472 = vmatprep.subr.mxu0 0.0
        %473 = vmatpush1.msra.mxu0 0.0
        %474 = vmatprep.subr.mxu0 0.0
        %475 = vmatpush1.msra.mxu0 0.0
        %476 = vmatprep.subr.mxu0 0.0
        %477 = vmatpush1.msra.mxu0 0.0
        %478 = vmatprep.subr.mxu0 0.0
        %479 = vmatpush1.msra.mxu0 0.0
        %480 = vmatprep.subr.mxu0 0.0
        %481 = vmatpush1.msra.mxu0 %v423
        %482 = vmatprep.subr.mxu0 0.0
        %483 = vmatpush1.msra.mxu0 %v422
        %484 = vmatprep.subr.mxu0 0.0
        %485 = vmatpush1.msra.mxu0 %v421
        %486 = vmatprep.subr.mxu0 0.0
        %487 = vmatpush1.msra.mxu0 %v420
        %488 = vmatprep.subr.mxu0 0.0
        %489 = vmatpush2.msra.mxu0 0.0
        %490 = vmatprep.subr.mxu0 0.0
        %491 = vmatpush2.msra.mxu0 0.0
        %492 = vmatprep.subr.mxu0 0.0
        %493 = vmatpush2.msra.mxu0 0.0
        %494 = vmatprep.subr.mxu0 0.0
        %495 = vmatpush2.msra.mxu0 0.0
        %496 = vmatprep.subr.mxu0 0.0
        %497 = vmatpush2.msra.mxu0 0.0
        %498 = vmatprep.subr.mxu0 0.0
        %499 = vmatpush2.msra.mxu0 0.0
        %500 = vmatprep.subr.mxu0 0.0
        %501 = vmatpush2.msra.mxu0 0.0
        %502 = vmatprep.subr.mxu0 0.0
        %503 = vmatpush2.msra.mxu0 0.0
        %504 = vmatprep.subr.mxu0 0.0
        %505 = vmatpush2.msra.mxu0 0.0
        %506 = vmatprep.subr.mxu0 0.0
        %507 = vmatpush2.msra.mxu0 0.0
        %508 = vmatprep.subr.mxu0 0.0
        %509 = vmatpush2.msra.mxu0 0.0
        %510 = vmatprep.subr.mxu0 0.0
        %511 = vmatpush2.msra.mxu0 0.0
        %512 = vmatprep.subr.mxu0 0.0
        %513 = vmatpush2.msra.mxu0 0.0
        %514 = vmatprep.subr.mxu0 0.0
        %515 = vmatpush2.msra.mxu0 0.0
        %516 = vmatprep.subr.mxu0 0.0
        %517 = vmatpush2.msra.mxu0 0.0
        %518 = vmatprep.subr.mxu0 0.0
        %519 = vmatpush2.msra.mxu0 0.0
        %520 = vmatprep.mubr.f32.mxu0 0.0
        %521 = vmatmul.mubr.f32.gmra.mxu0 %v433
        %v522 = vpop.f32.mrf.mxu0
        %v523 = vadd.f32 %v429, %v522
        %v524 = vpop.f32.mrf.mxu0
        %525 = vmatprep.mubr.f32.mxu0 0.0
        %526 = vmatmul.mubr.f32.gmra.mxu0 %v436
        %v527 = vpop.f32.mrf.mxu0
        %v528 = vadd.f32 %v429, %v527
        %v529 = vpop.f32.mrf.mxu0
        %530 = vmatprep.mubr.f32.mxu0 0.0
        %531 = vmatmul.mubr.f32.gmra.mxu0 %v439
        %v532 = vpop.f32.mrf.mxu0
        %v533 = vadd.f32 %v429, %v532
        %v534 = vpop.f32.mrf.mxu0
        %535 = vmatprep.mubr.f32.mxu0 0.0
        %536 = vmatmul.mubr.f32.gmra.mxu0 %v442
        %v537 = vpop.f32.mrf.mxu0
        %v538 = vadd.f32 %v429, %v537
        %v539 = vpop.f32.mrf.mxu0
        %540 = vmatprep.mubr.f32.mxu0 0.0
        %541 = vmatmul.mubr.f32.gmra.mxu0 %v445
        %v542 = vpop.f32.mrf.mxu0
        %v543 = vadd.f32 %v429, %v542
        %v544 = vpop.f32.mrf.mxu0
        %545 = vmatprep.mubr.f32.mxu0 0.0
        %546 = vmatmul.mubr.f32.gmra.mxu0 %v448
        %v547 = vpop.f32.mrf.mxu0
        %v548 = vadd.f32 %v429, %v547
        %v549 = vpop.f32.mrf.mxu0
        %550 = vmatprep.mubr.f32.mxu0 0.0
        %551 = vmatmul.mubr.f32.gmra.mxu0 %v451
        %v552 = vpop.f32.mrf.mxu0
        %v553 = vadd.f32 %v429, %v552
        %v554 = vpop.f32.mrf.mxu0
        %555 = vmatprep.mubr.f32.mxu0 0.0
        %556 = vmatmul.mubr.f32.gmra.mxu0 %v454
        %v557 = vpop.f32.mrf.mxu0
        %v558 = vadd.f32 %v429, %v557
        %v559 = vpop.f32.mrf.mxu0
        %560 = vdwg.mxu0
        %v563 = vunpack.c.l.s4 1966171168
        %v564 = vunpack.c.0.s8 %v563
        %v565 = vlaneseq
        %v566 = vshrl.u32 %v565, 7
        %v567 = vsub.s32 %v564, %v566
        %v568 = vrot.slane %v417, %v567
        %v569 = vcombine.high %v568, %v568
        %v571 = vunpack.c.l.s4 1966171168
        %v572 = vunpack.c.0.s8 %v571
        %v573 = vlaneseq
        %v574 = vshrl.u32 %v573, 7
        %v575 = vsub.s32 %v572, %v574
        %v576 = vrot.slane %v568, %v575
        %v578 = vunpack.c.l.s4 1966171168
        %v579 = vunpack.c.0.s8 %v578
        %v580 = vlaneseq
        %v581 = vshrl.u32 %v580, 7
        %v582 = vsub.s32 %v579, %v581
        %v583 = vrot.slane %v569, %v582
        %v584 = vcombine.high %v576, %v576
        %v585 = vcombine.high %v583, %v583
        %v586 = vlaneseq
        %v587 = vshrl.u32 %v586, 7
        %v588 = vsub.s32 0, %v587
        %v589 = vrot.slane %v576, %v588
        %v590 = vlaneseq
        %v591 = vshrl.u32 %v590, 7
        %v592 = vsub.s32 0, %v591
        %v593 = vrot.slane %v583, %v592
        %v594 = vlaneseq
        %v595 = vshrl.u32 %v594, 7
        %v596 = vsub.s32 0, %v595
        %v597 = vrot.slane %v584, %v596
        %v598 = vlaneseq
        %v599 = vshrl.u32 %v598, 7
        %v600 = vsub.s32 0, %v599
        %v601 = vrot.slane %v585, %v600
        %v606 = vmul.f32 %v523, %v589
        %v607 = vmul.f32 %v528, %v589
        %v608 = vmul.f32 %v533, %v593
        %v609 = vmul.f32 %v538, %v593
        %v610 = vmul.f32 %v543, %v597
        %v611 = vmul.f32 %v548, %v597
        %v612 = vmul.f32 %v553, %v601
        %v613 = vmul.f32 %v558, %v601
        %v614 = vsel %vm431, %v606, 0.0
        %615 = vadd.xlane.f32.xlu0 %v614
        %v616 = vpop.xlane.xlu0 %615
        %v617 = vsel %vm431, %v607, 0.0
        %618 = vadd.xlane.f32.xlu0 %v617
        %v619 = vpop.xlane.xlu0 %618
        %v620 = vsel %vm431, %v608, 0.0
        %621 = vadd.xlane.f32.xlu0 %v620
        %v622 = vpop.xlane.xlu0 %621
        %v623 = vsel %vm431, %v609, 0.0
        %624 = vadd.xlane.f32.xlu0 %v623
        %v625 = vpop.xlane.xlu0 %624
        %v626 = vsel %vm431, %v610, 0.0
        %627 = vadd.xlane.f32.xlu0 %v626
        %v628 = vpop.xlane.xlu0 %627
        %v629 = vsel %vm431, %v611, 0.0
        %630 = vadd.xlane.f32.xlu0 %v629
        %v631 = vpop.xlane.xlu0 %630
        %v632 = vsel %vm431, %v612, 0.0
        %633 = vadd.xlane.f32.xlu0 %v632
        %v634 = vpop.xlane.xlu0 %633
        %v635 = vsel %vm431, %v613, 0.0
        %636 = vadd.xlane.f32.xlu0 %v635
        %v637 = vpop.xlane.xlu0 %636
        %v646 = vlaneseq
        %v647 = vand.u32 %v646, 127
        %v648 = vlaneseq
        %v649 = vshrl.u32 %v648, 7
        %v650 = vsub.s32 %v647, %v649
        %v651 = vrot.slane %v616, %v650
        %v652 = vadd.s32 %v647, 4294967288
        %v653 = vlaneseq
        %v654 = vshrl.u32 %v653, 7
        %v655 = vsub.s32 %v652, %v654
        %v656 = vrot.slane %v619, %v655
        %vm657 = vcmask 130112
        %v658 = vsel %vm657, %v656, %v651
        %v659 = vlaneseq
        %v660 = vshrl.u32 %v659, 7
        %v661 = vsub.s32 %v647, %v660
        %v662 = vrot.slane %v622, %v661
        %v663 = vlaneseq
        %v664 = vshrl.u32 %v663, 7
        %v665 = vsub.s32 %v652, %v664
        %v666 = vrot.slane %v625, %v665
        %v667 = vsel %vm657, %v666, %v662
        %v668 = vlaneseq
        %v669 = vshrl.u32 %v668, 7
        %v670 = vsub.s32 %v647, %v669
        %v671 = vrot.slane %v628, %v670
        %v672 = vlaneseq
        %v673 = vshrl.u32 %v672, 7
        %v674 = vsub.s32 %v652, %v673
        %v675 = vrot.slane %v631, %v674
        %v676 = vsel %vm657, %v675, %v671
        %v677 = vlaneseq
        %v678 = vshrl.u32 %v677, 7
        %v679 = vsub.s32 %v647, %v678
        %v680 = vrot.slane %v634, %v679
        %v681 = vlaneseq
        %v682 = vshrl.u32 %v681, 7
        %v683 = vsub.s32 %v652, %v682
        %v684 = vrot.slane %v637, %v683
        %v685 = vsel %vm657, %v684, %v680
        %vm686 = vcmask 1041409
        %v687 = vsel %vm686, %v667, %v658
        %vm688 = vcmask 1042434
        %v689 = vsel %vm688, %v676, %v687
        %vm690 = vcmask 1043459
        %v691 = vsel %vm690, %v685, %v689
        %vm693 = vcmask 125952
        %v694 = vsel %vm693, %v691, -inf
        %695 = vmax.xlane.f32.xlu0 %v694
        %v696 = vpop.xlane.xlu0 %695
        %v698 = vlaneseq
        %v699 = vshrl.u32 %v698, 7
        %v700 = vsub.s32 0, %v699
        %v701 = vrot.slane %v696, %v700
        %v702 = vlaneseq
        %v703 = vshrl.u32 %v702, 7
        %v704 = vsub.s32 1, %v703
        %v705 = vrot.slane %v696, %v704
        %v706 = vlaneseq
        %v707 = vshrl.u32 %v706, 7
        %v708 = vsub.s32 2, %v707
        %v709 = vrot.slane %v696, %v708
        %v710 = vlaneseq
        %v711 = vshrl.u32 %v710, 7
        %v712 = vsub.s32 3, %v711
        %v713 = vrot.slane %v696, %v712
        %v718 = vsub.f32 %v616, %v701
        %v719 = vsub.f32 %v619, %v701
        %v720 = vsub.f32 %v622, %v705
        %v721 = vsub.f32 %v625, %v705
        %v722 = vsub.f32 %v628, %v709
        %v723 = vsub.f32 %v631, %v709
        %v724 = vsub.f32 %v634, %v713
        %v725 = vsub.f32 %v637, %v713
        %v726 = vmul.f32 %v718, 1.442695
        %v727 = vpow.pop %v726
        %v728 = vmul.f32 %v719, 1.442695
        %v729 = vpow.pop %v728
        %v730 = vmul.f32 %v720, 1.442695
        %v731 = vpow.pop %v730
        %v732 = vmul.f32 %v721, 1.442695
        %v733 = vpow.pop %v732
        %v734 = vmul.f32 %v722, 1.442695
        %v735 = vpow.pop %v734
        %v736 = vmul.f32 %v723, 1.442695
        %v737 = vpow.pop %v736
        %v738 = vmul.f32 %v724, 1.442695
        %v739 = vpow.pop %v738
        %v740 = vmul.f32 %v725, 1.442695
        %v741 = vpow.pop %v740
        %750 = vset.pattern.permute.xlu0 0
        %751 = vperm.xlu0 %750, %v727
        %v752 = vpop.permute.xlu0 %751
        %753 = vset.pattern.permute.xlu0 0
        %754 = vperm.xlu0 %753, %v729
        %v755 = vpop.permute.xlu0 %754
        %756 = vset.pattern.permute.xlu0 0
        %757 = vperm.xlu0 %756, %v731
        %v758 = vpop.permute.xlu0 %757
        %759 = vset.pattern.permute.xlu0 0
        %760 = vperm.xlu0 %759, %v733
        %v761 = vpop.permute.xlu0 %760
        %762 = vset.pattern.permute.xlu0 0
        %763 = vperm.xlu0 %762, %v735
        %v764 = vpop.permute.xlu0 %763
        %765 = vset.pattern.permute.xlu0 0
        %766 = vperm.xlu0 %765, %v737
        %v767 = vpop.permute.xlu0 %766
        %768 = vset.pattern.permute.xlu0 0
        %769 = vperm.xlu0 %768, %v739
        %v770 = vpop.permute.xlu0 %769
        %771 = vset.pattern.permute.xlu0 0
        %772 = vperm.xlu0 %771, %v741
        %v773 = vpop.permute.xlu0 %772
        %v774 = vlaneseq
        %v775 = vshrl.u32 %v774, 7
        %v776 = vsub.s32 %v647, %v775
        %v777 = vrot.slane %v752, %v776
        %v778 = vlaneseq
        %v779 = vshrl.u32 %v778, 7
        %v780 = vsub.s32 %v652, %v779
        %v781 = vrot.slane %v755, %v780
        %v782 = vsel %vm657, %v781, %v777
        %v783 = vlaneseq
        %v784 = vshrl.u32 %v783, 7
        %v785 = vsub.s32 %v647, %v784
        %v786 = vrot.slane %v758, %v785
        %v787 = vlaneseq
        %v788 = vshrl.u32 %v787, 7
        %v789 = vsub.s32 %v652, %v788
        %v790 = vrot.slane %v761, %v789
        %v791 = vsel %vm657, %v790, %v786
        %v792 = vlaneseq
        %v793 = vshrl.u32 %v792, 7
        %v794 = vsub.s32 %v647, %v793
        %v795 = vrot.slane %v764, %v794
        %v796 = vlaneseq
        %v797 = vshrl.u32 %v796, 7
        %v798 = vsub.s32 %v652, %v797
        %v799 = vrot.slane %v767, %v798
        %v800 = vsel %vm657, %v799, %v795
        %v801 = vlaneseq
        %v802 = vshrl.u32 %v801, 7
        %v803 = vsub.s32 %v647, %v802
        %v804 = vrot.slane %v770, %v803
        %v805 = vlaneseq
        %v806 = vshrl.u32 %v805, 7
        %v807 = vsub.s32 %v652, %v806
        %v808 = vrot.slane %v773, %v807
        %v809 = vsel %vm657, %v808, %v804
        %v810 = vsel %vm686, %v791, %v782
        %v811 = vsel %vm688, %v800, %v810
        %v812 = vsel %vm690, %v809, %v811
        %v814 = vsel %vm693, %v812, 0.0
        %815 = vadd.xlane.f32.xlu0 %v814
        %v816 = vpop.xlane.xlu0 %815
        %v817 = vrcp.pop %v816
        %v819 = vlaneseq
        %v820 = vshrl.u32 %v819, 7
        %v821 = vsub.s32 0, %v820
        %v822 = vrot.slane %v817, %v821
        %v823 = vlaneseq
        %v824 = vshrl.u32 %v823, 7
        %v825 = vsub.s32 1, %v824
        %v826 = vrot.slane %v817, %v825
        %v827 = vlaneseq
        %v828 = vshrl.u32 %v827, 7
        %v829 = vsub.s32 2, %v828
        %v830 = vrot.slane %v817, %v829
        %v831 = vlaneseq
        %v832 = vshrl.u32 %v831, 7
        %v833 = vsub.s32 3, %v832
        %v834 = vrot.slane %v817, %v833
        %v839 = vmul.f32 %v727, %v822
        %v840 = vmul.f32 %v729, %v822
        %v841 = vmul.f32 %v731, %v826
        %v842 = vmul.f32 %v733, %v826
        %v843 = vmul.f32 %v735, %v830
        %v844 = vmul.f32 %v737, %v830
        %v845 = vmul.f32 %v739, %v834
        %v846 = vmul.f32 %v741, %v834
        %848 = vset.pattern.permute.xlu0 0
        %849 = vperm.xlu0 %848, %v839
        %v850 = vpop.permute.xlu0 %849
        %853 = vset.pattern.permute.xlu0 0
        %854 = vperm.xlu0 %853, %v840
        %v855 = vpop.permute.xlu0 %854
        %858 = vset.pattern.permute.xlu0 0
        %859 = vperm.xlu0 %858, %v841
        %v860 = vpop.permute.xlu0 %859
        %863 = vset.pattern.permute.xlu0 0
        %864 = vperm.xlu0 %863, %v842
        %v865 = vpop.permute.xlu0 %864
        %868 = vset.pattern.permute.xlu0 0
        %869 = vperm.xlu0 %868, %v843
        %v870 = vpop.permute.xlu0 %869
        %873 = vset.pattern.permute.xlu0 0
        %874 = vperm.xlu0 %873, %v844
        %v875 = vpop.permute.xlu0 %874
        %878 = vset.pattern.permute.xlu0 0
        %879 = vperm.xlu0 %878, %v845
        %v880 = vpop.permute.xlu0 %879
        %883 = vset.pattern.permute.xlu0 0
        %884 = vperm.xlu0 %883, %v846
        %v885 = vpop.permute.xlu0 %884
        %v887 = vmul.f32 %v850, %v523
        %v888 = vmul.f32 %v855, %v528
        %v889 = vmul.f32 %v860, %v533
        %v890 = vmul.f32 %v865, %v538
        %v891 = vmul.f32 %v870, %v543
        %v892 = vmul.f32 %v875, %v548
        %v893 = vmul.f32 %v880, %v553
        %v894 = vmul.f32 %v885, %v558
        %vm895 = vcmask 523520
        %v896 = vsel %vm895, %v887, 0.0
        %v897 = vsel %vm895, %v888, 0.0
        %v898 = vadd.f32 %v896, %v897
        %v899 = vrot.slane %v898, 4
        %v900 = vadd.f32 %v898, %v899
        %v901 = vrot.slane %v900, 2
        %v902 = vadd.f32 %v900, %v901
        %v903 = vrot.slane %v902, 1
        %v904 = vadd.f32 %v902, %v903
        %v905 = vsel %vm895, %v889, 0.0
        %v906 = vsel %vm895, %v890, 0.0
        %v907 = vadd.f32 %v905, %v906
        %v908 = vrot.slane %v907, 4
        %v909 = vadd.f32 %v907, %v908
        %v910 = vrot.slane %v909, 2
        %v911 = vadd.f32 %v909, %v910
        %v912 = vrot.slane %v911, 1
        %v913 = vadd.f32 %v911, %v912
        %v914 = vsel %vm895, %v891, 0.0
        %v915 = vsel %vm895, %v892, 0.0
        %v916 = vadd.f32 %v914, %v915
        %v917 = vrot.slane %v916, 4
        %v918 = vadd.f32 %v916, %v917
        %v919 = vrot.slane %v918, 2
        %v920 = vadd.f32 %v918, %v919
        %v921 = vrot.slane %v920, 1
        %v922 = vadd.f32 %v920, %v921
        %v923 = vsel %vm895, %v893, 0.0
        %v924 = vsel %vm895, %v894, 0.0
        %v925 = vadd.f32 %v923, %v924
        %v926 = vrot.slane %v925, 4
        %v927 = vadd.f32 %v925, %v926
        %v928 = vrot.slane %v927, 2
        %v929 = vadd.f32 %v927, %v928
        %v930 = vrot.slane %v929, 1
        %v931 = vadd.f32 %v929, %v930
        %936 = vrot.lane.b32.xlu0 %v904, 96
        %v937 = vpop.permute.xlu0 %936
        %938 = vrot.lane.b32.xlu0 %v913, 96
        %v939 = vpop.permute.xlu0 %938
        %940 = vrot.lane.b32.xlu0 %v922, 96
        %v941 = vpop.permute.xlu0 %940
        %942 = vrot.lane.b32.xlu0 %v931, 96
        %v943 = vpop.permute.xlu0 %942
        %vm948 = vcmask 253952
        %949 = vst.msk [vmem:[%s284] sm:$0x1] %vm948, %v937
        %950 = vst.msk [vmem:[%s284 + $0x1] sm:$0x1] %vm948, %v939
        %951 = vst.msk [vmem:[%s284 + $0x2] sm:$0x1] %vm948, %v941
        %952 = vst.msk [vmem:[%s284 + $0x3] sm:$0x1] %vm948, %v943
        %s953 = sand.u32 %s167, 1
        %s954 = scalar_lea.sflag [#allocation4], %s953
        %s955 = sand.u32 %s167, 1
        %s956 = smul.addr %s955, 4
        %s957 = scalar_lea.vmem [#allocation5], %s956
        // Predicated region
        $region49: #{tpu_custom_call.1} parent=43 // pred_check
          %p958 = pneg %p177
        $region50: #{tpu_custom_call.1} parent=43 // pred_check_branch
          %960 = sbr.rel (%p958) target = $region52
        $region51: #{tpu_custom_call.1} parent=43 // pred_region
          %s961 = smul.u32 4, %s23
          %s963 = ssub.s32 64, 64
          %964 = vsyncadd %s954, %s963
          %s965 = smul.addr %s961, 16
          %s966 = scalar_lea.hbm %s6, %s965
          %s967 = sshll.u32 %s957, 4
          %s968 = int_to_ptr.vmem [resolvable:$true] %s967
          %973 = dma.vmem_to_hbm [thread:$0]  %s968, 64, %s966, %s954, 16, 16, 1
        $region52: #{tpu_custom_call.1} parent=43 // pred_fallthru
          _
      $region44: #{tpu_custom_call.1} parent=5 // pred_fallthru
        _
      %p974 = scmp.le.s32.totalorder 2, %s18
      // Predicated region
      $region53: #{tpu_custom_call.1} parent=5 // pred_check
        %p975 = pneg %p974
      $region54: #{tpu_custom_call.1} parent=5 // pred_check_branch
        %977 = sbr.rel (%p975) target = $region56
      $region55: #{tpu_custom_call.1} parent=5 // pred_region
        %s978 = ssub.s32 %s18, 2
        // Predicated region
        $region57: #{tpu_custom_call.1} parent=55 // pred_check
          %p979 = pneg %p183
        $region58: #{tpu_custom_call.1} parent=55 // pred_check_branch
          %981 = sbr.rel (%p979) target = $region60
        $region59: #{tpu_custom_call.1} parent=55 // pred_region
          %s982 = sand.u32 %s168, 1
          %s983 = scalar_lea.sflag [#allocation4], %s982
          %s984 = sand.u32 %s168, 1
          %s985 = smul.addr %s984, 4
          %s986 = scalar_lea.vmem [#allocation5], %s985
          %987 = dma.done %s983, 64
        $region60: #{tpu_custom_call.1} parent=55 // pred_fallthru
          _
      $region56: #{tpu_custom_call.1} parent=5 // pred_fallthru
        _
    $region6: #{tpu_custom_call.1} parent=1 // loop_footer
      %s22 = sadd.s32 1, %s18
    $region7: #{tpu_custom_call.1} parent=1 // loop_footer_branch
      %17 = sbr.rel target = $region3
    $region8: #{tpu_custom_call.1} parent=1 // loop_exit
      _
    %988 = vsyncpa [#allocation3], 1
    %s989 = scalar_lea.sflag [#allocation3], 1
    %990 = vsyncpa %s989, 1
    %991 = vsyncpa [#allocation4], 1
    %s992 = scalar_lea.sflag [#allocation4], 1
    %993 = vsyncpa %s992, 1

</llo_original>
